<compile_context>
chip_gen: v7x
topology: tpu7x:2x2x1
jax: 0.10.0
libtpu: 0.0.40
codegen_flags: <defaults>
</compile_context>

<pallas_src>
import functools

import jax
import jax.numpy as jnp
from jax.experimental import pallas as pl
from jax.experimental.pallas import tpu as pltpu


# ----------------------------------------------------------------------------
# Kernel: strided depthwise conv (spatial reduction) + bias + LayerNorm, fused
# ----------------------------------------------------------------------------
def _dwconv_ln_kernel(x_ref, w_ref, b_ref, g_ref, b2_ref, o_ref, *, sr, eps=1e-5):
    # x: (Hp, Wp, C) zero-padded NHWC tile, w: (K, K, C), b/g/b2: (1, C)
    # o: (Ho, Wo, C) = LayerNorm_C(depthwise_conv_stride_sr(x) + b)
    Ho, Wo, C = o_ref.shape
    K = w_ref.shape[0]
    w = w_ref[...].astype(jnp.float32)
    acc = jnp.zeros((Ho, Wo, C), jnp.float32)
    for kh in range(K):
        for kw in range(K):
            # Only the outputs that survive the stride are computed: the input is
            # sampled at (kh + sr*oh, kw + sr*ow) with strided loads.
            # TODO(synk): at large sr (stage 1, K^2=81 taps) move the W-stride to a
            # leading axis via a wrapper-side reshape so these become contiguous
            # vector loads instead of sublane-strided ones.
            tap = x_ref[pl.ds(kh, Ho, stride=sr), pl.ds(kw, Wo, stride=sr), :]
            acc = acc + tap.astype(jnp.float32) * w[kh:kh + 1, kw:kw + 1, :]
    acc = acc + b_ref[...].reshape(1, 1, C).astype(jnp.float32)
    # PyTorch LayerNorm over C (biased variance, eps inside sqrt), fused epilogue.
    mu = jnp.mean(acc, axis=-1, keepdims=True)
    var = jnp.mean(jnp.square(acc - mu), axis=-1, keepdims=True)
    y = (acc - mu) * jax.lax.rsqrt(var + eps)
    o_ref[...] = (y * g_ref[...].reshape(1, 1, C).astype(jnp.float32)
                  + b2_ref[...].reshape(1, 1, C).astype(jnp.float32)).astype(o_ref.dtype)


def dwconv_ln(x_nhwc, w, b, gamma, beta, sr):
    """Strided depthwise conv (kernel sr+1, stride sr, pad sr//2) + LayerNorm."""
    B, H, W, C = x_nhwc.shape
    K = w.shape[0]
    pad = sr // 2
    Ho = (H + 2 * pad - K) // sr + 1
    Wo = (W + 2 * pad - K) // sr + 1
    # Extra `sr` rows/cols of zeros on the bottom/right are never read by a valid
    # tap; they only keep the strided-slice bounds trivially in range.
    xp = jnp.pad(x_nhwc, ((0, 0), (pad, pad + sr), (pad, pad + sr), (0, 0)))
    Hp, Wp = xp.shape[1], xp.shape[2]
    # TODO(synk): emit bf16 here when the consumer runs bf16 MXU operands (the
    # transform attention path below intentionally keeps f32 operands).
    out = pl.pallas_call(
        functools.partial(_dwconv_ln_kernel, sr=sr),
        grid=(B,),
        in_specs=[
            pl.BlockSpec((None, Hp, Wp, C), lambda i: (i, 0, 0, 0)),
            pl.BlockSpec((K, K, C), lambda i: (0, 0, 0)),
            pl.BlockSpec((1, C), lambda i: (0, 0)),
            pl.BlockSpec((1, C), lambda i: (0, 0)),
            pl.BlockSpec((1, C), lambda i: (0, 0)),
        ],
        out_specs=pl.BlockSpec((None, Ho, Wo, C), lambda i: (i, 0, 0, 0)),
        out_shape=jax.ShapeDtypeStruct((B, Ho, Wo, C), jnp.float32),
        compiler_params=pltpu.CompilerParams(dimension_semantics=("parallel",)),
    )(xp, w, b.reshape(1, C), gamma.reshape(1, C), beta.reshape(1, C))
    return out.reshape(B, Ho * Wo, C)


# ----------------------------------------------------------------------------
# Fused attention kernels (q/kv projections + attention + output projection)
# ----------------------------------------------------------------------------
def _attn_core(x, xkv, wq_ref, wkv_ref, wp_ref, bp_ref, o_ref, ctx_ref, *,
               scale, num_heads):
    # Non-transform path.  x: (tq, C) query tile, xkv: (Nk, C).  bf16 MXU
    # operands with f32 accumulation; per-head contexts are written into the lane
    # slices of one (tq, C) bf16 buffer and a single C-wide projection finishes.
    C = wq_ref.shape[0]
    hd = C // num_heads
    bf = jnp.bfloat16
    wq = (wq_ref[...] * scale).astype(bf)        # softmax scale folded into the weight
    wkv = wkv_ref[...].astype(bf)
    q = jnp.dot(x.astype(bf), wq, preferred_element_type=jnp.float32).astype(bf)   # (tq, C)
    kv = jnp.dot(xkv.astype(bf), wkv, preferred_element_type=jnp.float32).astype(bf)  # (Nk, 2C)
    for h in range(num_heads):
        qh = q[:, h * hd:(h + 1) * hd]
        kh = kv[:, h * hd:(h + 1) * hd]
        vh = kv[:, C + h * hd:C + (h + 1) * hd]
        # TODO(synk): for sr_ratio==1 at very high resolution, tile Nk here with an
        # online softmax (flash style) to bound the (tq, Nk) score map.
        s = jax.lax.dot_general(qh, kh, (((1,), (1,)), ((), ())),
                                preferred_element_type=jnp.float32)      # (tq, Nk)
        m = jnp.max(s, axis=-1, keepdims=True)
        p = jnp.exp(s - m)
        attn = p * pl.reciprocal(jnp.sum(p, axis=-1, keepdims=True), approx=True)
        ctx_ref[:, h * hd:(h + 1) * hd] = jnp.dot(
            attn.astype(bf), vh, preferred_element_type=jnp.float32).astype(ctx_ref.dtype)
    out = jnp.dot(ctx_ref[...], wp_ref[...].astype(bf),
                  preferred_element_type=jnp.float32)                    # (tq, C)
    o_ref[...] = (out + bp_ref[...].astype(jnp.float32)).astype(o_ref.dtype)


def _attn_kernel(x_ref, xkv_ref, wq_ref, wkv_ref, wp_ref, bp_ref, o_ref, ctx_ref,
                 *, scale, num_heads):
    _attn_core(x_ref[...], xkv_ref[...], wq_ref, wkv_ref, wp_ref, bp_ref,
               o_ref, ctx_ref, scale=scale, num_heads=num_heads)


def _attn_kernel_shared(x_ref, wq_ref, wkv_ref, wp_ref, bp_ref, o_ref, ctx_ref,
                        *, scale, num_heads):
    # sr_ratio == 1: reuse the single x block for both q and kv (no duplicate
    # HBM read / second double-buffered VMEM block).
    xv = x_ref[...]
    _attn_core(xv, xv, wq_ref, wkv_ref, wp_ref, bp_ref, o_ref, ctx_ref,
               scale=scale, num_heads=num_heads)


def _attn_transform_kernel(x_ref, xkv_ref, wq_ref, wkv_ref, wp_ref, bp_ref,
                           wt_ref, bt_ref, o_ref, ctx_ref, *, scale, num_heads):
    # Transform path.  The 1x1 head-mixing conv is folded into the score matmul:
    # for output head g, q's per-head lane slices are scaled by wt[g, h] (VPU) and
    # the scores come from ONE C-wide contraction (no (nh, N, Nk) scratch, no nh^2
    # mixing loop).  All matmuls keep f32 operands: the post-softmax InstanceNorm
    # divides by the (small) std of the probabilities and amplifies any operand
    # rounding, which is what pushed the all-bf16 version past tolerance.
    N, C = x_ref.shape
    hd = C // num_heads
    f32 = jnp.float32
    wq = wq_ref[...] * scale                     # softmax scale folded into the weight
    q = jnp.dot(x_ref[...], wq, preferred_element_type=f32)                 # (N, C)
    kv = jnp.dot(xkv_ref[...], wkv_ref[...], preferred_element_type=f32)    # (Nk, 2C)
    k = kv[:, :C]
    head_of_col = jax.lax.broadcasted_iota(jnp.int32, (1, C), 1) // hd      # (1, C)
    for g in range(num_heads):
        cs = jnp.zeros((1, C), f32)
        for h in range(num_heads):
            cs = cs + (head_of_col == h).astype(f32) * wt_ref[g, h]
        s = jax.lax.dot_general(q * cs, k, (((1,), (1,)), ((), ())),
                                preferred_element_type=f32) + bt_ref[g]     # (N, Nk)
        m = jnp.max(s, axis=-1, keepdims=True)
        p = jnp.exp(s - m)
        attn = p / jnp.sum(p, axis=-1, keepdims=True)   # exact divide pre-InstanceNorm
        # InstanceNorm2d (no affine): normalize over the whole (N, Nk) map.
        mu = jnp.mean(attn, axis=(0, 1), keepdims=True)
        var = jnp.mean(jnp.square(attn - mu), axis=(0, 1), keepdims=True)
        attn = (attn - mu) * jax.lax.rsqrt(var + 1e-5)
        vg = kv[:, C + g * hd:C + (g + 1) * hd]
        ctx_ref[:, g * hd:(g + 1) * hd] = jnp.dot(attn, vg,
                                                  preferred_element_type=f32)
    out = jnp.dot(ctx_ref[...], wp_ref[...], preferred_element_type=f32)
    o_ref[...] = (out + bp_ref[...]).astype(o_ref.dtype)


# ----------------------------------------------------------------------------
# pallas_call wrapper
# ----------------------------------------------------------------------------
def _pick_tq(n):
    # Largest "nice" query-tile that divides N; N itself when nothing fits.
    for t in (512, 448, 392, 256, 196, 128):
        if n % t == 0 and n > t:
            return t
    return n


def _vmem_limit_bytes(tq, nk, c):
    # Double-buffered in/out blocks + f32 intermediates, generous slack.
    # Floor 32 MiB (> every scoped default), cap 64 MiB (v7x physical VMEM).
    blocks = 8 * (2 * tq * c + nk * c + 4 * c * c + c)
    live = 4 * (2 * tq * c + 2 * nk * c + 3 * tq * nk + tq * c)
    est = 4 * (blocks + live)
    return int(min(64 * 1024 * 1024, max(32 * 1024 * 1024, est)))


def _attn_call(x, xkv, wq, wkv, wp, bp, scale, num_heads, wt=None, bt=None):
    """xkv=None means 'reuse x for kv' (sr_ratio == 1)."""
    B, N, C = x.shape
    transform = wt is not None
    shared = xkv is None
    Nk = N if shared else xkv.shape[1]
    bp2 = bp.reshape(1, C)

    if transform:
        # TODO(synk): the InstanceNorm over the full (N, Nk) map prevents query /
        # key tiling here without a two-pass (stats, then normalize) variant.
        if shared:
            # TODO(synk): add a shared-x transform variant to also drop the
            # duplicate HBM read when sr_ratio == 1.
            xkv = x
        tq = N
        grid = (B,)
        in_specs = [
            pl.BlockSpec((None, N, C), lambda b: (b, 0, 0)),
            pl.BlockSpec((None, Nk, C), lambda b: (b, 0, 0)),
            pl.BlockSpec((C, C), lambda b: (0, 0)),
            pl.BlockSpec((C, 2 * C), lambda b: (0, 0)),
            pl.BlockSpec((C, C), lambda b: (0, 0)),
            pl.BlockSpec((1, C), lambda b: (0, 0)),
            pl.BlockSpec((num_heads, num_heads), lambda b: (0, 0),
                         memory_space=pltpu.MemorySpace.SMEM),
            pl.BlockSpec((num_heads,), lambda b: (0,),
                         memory_space=pltpu.MemorySpace.SMEM),
        ]
        out_spec = pl.BlockSpec((None, N, C), lambda b: (b, 0, 0))
        args = (x, xkv, wq, wkv, wp, bp2, wt, bt)
        kernel = functools.partial(_attn_transform_kernel, scale=scale,
                                   num_heads=num_heads)
        scratch = [pltpu.VMEM((N, C), jnp.float32)]
        semantics = ("parallel",)
    else:
        tq = _pick_tq(N)
        ntile = N // tq
        if shared and ntile > 1:
            # kv needs the full x while q is tiled -> fall back to two inputs.
            xkv = x
            shared = False
        grid = (B, ntile)
        x_spec = pl.BlockSpec((None, tq, C), lambda b, n: (b, n, 0))
        kv_spec = pl.BlockSpec((None, Nk, C), lambda b, n: (b, 0, 0))
        w_cc = pl.BlockSpec((C, C), lambda b, n: (0, 0))
        w_c2c = pl.BlockSpec((C, 2 * C), lambda b, n: (0, 0))
        w_1c = pl.BlockSpec((1, C), lambda b, n: (0, 0))
        out_spec = pl.BlockSpec((None, tq, C), lambda b, n: (b, n, 0))
        if shared:
            in_specs = [x_spec, w_cc, w_c2c, w_cc, w_1c]
            args = (x, wq, wkv, wp, bp2)
            kernel = functools.partial(_attn_kernel_shared, scale=scale,
                                       num_heads=num_heads)
        else:
            in_specs = [x_spec, kv_spec, w_cc, w_c2c, w_cc, w_1c]
            args = (x, xkv, wq, wkv, wp, bp2)
            kernel = functools.partial(_attn_kernel, scale=scale,
                                       num_heads=num_heads)
        scratch = [pltpu.VMEM((tq, C), jnp.bfloat16)]
        semantics = ("parallel", "parallel")

    return pl.pallas_call(
        kernel,
        grid=grid,
        in_specs=in_specs,
        out_specs=out_spec,
        out_shape=jax.ShapeDtypeStruct((B, N, C), jnp.float32),
        scratch_shapes=scratch,
        compiler_params=pltpu.CompilerParams(
            dimension_semantics=semantics,
            vmem_limit_bytes=_vmem_limit_bytes(tq, Nk, C)),
    )(*args)


# ----------------------------------------------------------------------------
# Full forward (Pallas) — mirrors Attention.forward(x, H, W)
# ----------------------------------------------------------------------------
def attention_pallas(x, H, W, p, num_heads, sr_ratio, apply_transform):
    B, N, C = x.shape
    hd = C // num_heads
    scale = hd ** (-0.5)
    apply_transform = apply_transform and num_heads > 1

    if sr_ratio > 1:
        # x.permute(0,2,1).reshape(B,C,H,W) in NCHW holds the same data as
        # x.reshape(B,H,W,C) viewed channels-last (free reshape, no relayout).
        x_img = x.reshape(B, H, W, C)
        xkv = dwconv_ln(x_img, p["w_sr"], p["b_sr"], p["g_ln"], p["b_ln"], sr_ratio)
    else:
        xkv = None  # kernel reuses x for kv (no duplicate HBM read)

    if apply_transform:
        return _attn_call(x, xkv, p["wq"], p["wkv"], p["wp"], p["bp"], scale,
                          num_heads, p["wt"], p["bt"])
    return _attn_call(x, xkv, p["wq"], p["wkv"], p["wp"], p["bp"], scale, num_heads)


# ----------------------------------------------------------------------------
# Pure-JAX reference (mirrors the PyTorch math, full f32) for correctness checks
# ----------------------------------------------------------------------------
def attention_ref(x, H, W, p, num_heads, sr_ratio, apply_transform):
    B, N, C = x.shape
    hd = C // num_heads
    scale = hd ** (-0.5)
    apply_transform = apply_transform and num_heads > 1
    with jax.default_matmul_precision("highest"):   # scoped, not process-global
        q = (x @ p["wq"]).reshape(B, N, num_heads, hd).transpose(0, 2, 1, 3)
        if sr_ratio > 1:
            pad = sr_ratio // 2
            x_nchw = jnp.transpose(x, (0, 2, 1)).reshape(B, C, H, W)
            rhs = jnp.transpose(p["w_sr"], (2, 0, 1))[:, None, :, :]   # (C,1,K,K)
            y = jax.lax.conv_general_dilated(
                x_nchw, rhs, (sr_ratio, sr_ratio), [(pad, pad), (pad, pad)],
                feature_group_count=C, dimension_numbers=("NCHW", "OIHW", "NCHW"))
            y = y + p["b_sr"][None, :, None, None]
            x_ = y.reshape(B, C, -1).transpose(0, 2, 1)
            mu = x_.mean(-1, keepdims=True)
            var = jnp.square(x_ - mu).mean(-1, keepdims=True)
            x_ = (x_ - mu) / jnp.sqrt(var + 1e-5) * p["g_ln"] + p["b_ln"]
        else:
            x_ = x
        kv = (x_ @ p["wkv"]).reshape(B, -1, 2, num_heads, hd).transpose(2, 0, 3, 1, 4)
        k, v = kv[0], kv[1]

        attn = q @ jnp.swapaxes(k, -2, -1) * scale
        if apply_transform:
            attn = jnp.einsum("gh,bhnm->bgnm", p["wt"], attn) + p["bt"][None, :, None, None]
            attn = jax.nn.softmax(attn, axis=-1)
            mu = attn.mean(axis=(-2, -1), keepdims=True)
            var = jnp.square(attn - mu).mean(axis=(-2, -1), keepdims=True)
            attn = (attn - mu) / jnp.sqrt(var + 1e-5)
        else:
            attn = jax.nn.softmax(attn, axis=-1)
        out = jnp.swapaxes(attn @ v, 1, 2).reshape(B, N, C)
        return out @ p["wp"] + p["bp"]


# ----------------------------------------------------------------------------
if __name__ == "__main__":
    B, C, num_heads, H, W = 2, 32, 4, 8, 8
    N = H * W
    sr_ratio_full = 2
    K = sr_ratio_full + 1

    key = jax.random.PRNGKey(0)
    ks = jax.random.split(key, 11)
    params = {
        "wq":   0.1 * jax.random.normal(ks[0], (C, C), jnp.float32),
        "wkv":  0.1 * jax.random.normal(ks[1], (C, 2 * C), jnp.float32),
        "wp":   0.1 * jax.random.normal(ks[2], (C, C), jnp.float32),
        "bp":   0.1 * jax.random.normal(ks[3], (C,), jnp.float32),
        "w_sr": 0.2 * jax.random.normal(ks[4], (K, K, C), jnp.float32),
        "b_sr": 0.1 * jax.random.normal(ks[5], (C,), jnp.float32),
        "g_ln": 1.0 + 0.1 * jax.random.normal(ks[6], (C,), jnp.float32),
        "b_ln": 0.1 * jax.random.normal(ks[7], (C,), jnp.float32),
        "wt":   jnp.eye(num_heads, dtype=jnp.float32)
                + 0.3 * jax.random.normal(ks[8], (num_heads, num_heads), jnp.float32),
        "bt":   0.1 * jax.random.normal(ks[9], (num_heads,), jnp.float32),
    }
    x = jax.random.normal(ks[10], (B, N, C), jnp.float32)

    # (sr_ratio, apply_transform, abs tolerance vs. the full-f32 reference)
    #  * Non-transform configs run bf16 MXU operands (f32 accumulation) plus an
    #    approximate reciprocal in the softmax -> a few e-3 of rounding; 2e-2 bound.
    #  * The transform config keeps f32 matmul operands inside the kernel (exact
    #    divide before the InstanceNorm), but its bound is kept at the bf16-class
    #    worst case (~3% of the O(1..3) outputs): the InstanceNorm divides by the
    #    tiny std of the near-uniform softmax probabilities at these synthetic
    #    scales and amplifies any residual operand rounding ~40x.
    configs = [
        (sr_ratio_full, True, 9e-2),
        (sr_ratio_full, False, 2e-2),
        (1, False, 2e-2),
    ]
    for sr, tr, tol in configs:
        out = attention_pallas(x, H, W, params, num_heads, sr, tr)
        out = jax.block_until_ready(out)
        ref = attention_ref(x, H, W, params, num_heads, sr, tr)
        err = float(jnp.max(jnp.abs(out - ref)))
        assert err < tol, f"mismatch (sr={sr}, transform={tr}): max abs err {err}"

    print("KERNEL_OK")
</pallas_src>

<mosaic_0001>
module attributes {stable_mosaic.version = 11 : i64} {
  func.func @_dwconv_ln_kernel(%arg0: i32, %arg1: memref<1x12x12x32xf32, #tpu.memory_space<vmem>>, %arg2: memref<3x3x32xf32, #tpu.memory_space<vmem>>, %arg3: memref<1x32xf32, #tpu.memory_space<vmem>>, %arg4: memref<1x32xf32, #tpu.memory_space<vmem>>, %arg5: memref<1x32xf32, #tpu.memory_space<vmem>>, %arg6: memref<1x4x4x32xf32, #tpu.memory_space<vmem>>) attributes {dimension_semantics = [#tpu.dimension_semantics<parallel>], iteration_bounds = array<i64: 2>, scalar_prefetch = 0 : i64, scratch_operands = 0 : i64, tpu.core_type = #tpu.core_type<tc>, window_params = [{transform_indices = @transform_0, window_bounds = array<i64: 1, 12, 12, 32>}, {pipeline_mode = #tpu.pipeline_mode<synchronous>, transform_indices = @transform_1, window_bounds = array<i64: 3, 3, 32>}, {pipeline_mode = #tpu.pipeline_mode<synchronous>, transform_indices = @transform_2, window_bounds = array<i64: 1, 32>}, {pipeline_mode = #tpu.pipeline_mode<synchronous>, transform_indices = @transform_3, window_bounds = array<i64: 1, 32>}, {pipeline_mode = #tpu.pipeline_mode<synchronous>, transform_indices = @transform_4, window_bounds = array<i64: 1, 32>}, {transform_indices = @transform_5, window_bounds = array<i64: 1, 4, 4, 32>}]} {
    %c0 = arith.constant 0 : index
    %c0_0 = arith.constant 0 : index
    %c0_1 = arith.constant 0 : index
    %0 = vector.load %arg2[%c0, %c0_0, %c0_1] : memref<3x3x32xf32, #tpu.memory_space<vmem>>, vector<3x3x32xf32>
    %cst = arith.constant 0.000000e+00 : f32
    %1 = vector.broadcast %cst : f32 to vector<4x4x32xf32>
    %c0_2 = arith.constant 0 : index
    %c0_3 = arith.constant 0 : index
    %c0_4 = arith.constant 0 : index
    %c0_5 = arith.constant 0 : index
    %2 = tpu.strided_load %arg1[%c0_2, %c0_3, %c0_4, %c0_5] {strides = array<i32: 1, 2, 2, 1>} : memref<1x12x12x32xf32, #tpu.memory_space<vmem>>, vector<1x4x4x32xf32>
    %3 = vector.shape_cast %2 : vector<1x4x4x32xf32> to vector<4x4x32xf32>
    %4 = vector.extract_strided_slice %0 {offsets = [0, 0, 0], sizes = [1, 1, 32], strides = [1, 1, 1]} : vector<3x3x32xf32> to vector<1x1x32xf32>
    %5 = vector.broadcast %4 : vector<1x1x32xf32> to vector<4x4x32xf32>
    %6 = arith.mulf %3, %5 : vector<4x4x32xf32>
    %7 = arith.addf %1, %6 : vector<4x4x32xf32>
    %c0_6 = arith.constant 0 : index
    %c0_7 = arith.constant 0 : index
    %c1 = arith.constant 1 : index
    %c0_8 = arith.constant 0 : index
    %8 = tpu.strided_load %arg1[%c0_6, %c0_7, %c1, %c0_8] {strides = array<i32: 1, 2, 2, 1>} : memref<1x12x12x32xf32, #tpu.memory_space<vmem>>, vector<1x4x4x32xf32>
    %9 = vector.shape_cast %8 : vector<1x4x4x32xf32> to vector<4x4x32xf32>
    %10 = vector.extract_strided_slice %0 {offsets = [0, 1, 0], sizes = [1, 1, 32], strides = [1, 1, 1]} : vector<3x3x32xf32> to vector<1x1x32xf32>
    %11 = vector.broadcast %10 : vector<1x1x32xf32> to vector<4x4x32xf32>
    %12 = arith.mulf %9, %11 : vector<4x4x32xf32>
    %13 = arith.addf %7, %12 : vector<4x4x32xf32>
    %c0_9 = arith.constant 0 : index
    %c0_10 = arith.constant 0 : index
    %c2 = arith.constant 2 : index
    %c0_11 = arith.constant 0 : index
    %14 = tpu.strided_load %arg1[%c0_9, %c0_10, %c2, %c0_11] {strides = array<i32: 1, 2, 2, 1>} : memref<1x12x12x32xf32, #tpu.memory_space<vmem>>, vector<1x4x4x32xf32>
    %15 = vector.shape_cast %14 : vector<1x4x4x32xf32> to vector<4x4x32xf32>
    %16 = vector.extract_strided_slice %0 {offsets = [0, 2, 0], sizes = [1, 1, 32], strides = [1, 1, 1]} : vector<3x3x32xf32> to vector<1x1x32xf32>
    %17 = vector.broadcast %16 : vector<1x1x32xf32> to vector<4x4x32xf32>
    %18 = arith.mulf %15, %17 : vector<4x4x32xf32>
    %19 = arith.addf %13, %18 : vector<4x4x32xf32>
    %c0_12 = arith.constant 0 : index
    %c1_13 = arith.constant 1 : index
    %c0_14 = arith.constant 0 : index
    %c0_15 = arith.constant 0 : index
    %20 = tpu.strided_load %arg1[%c0_12, %c1_13, %c0_14, %c0_15] {strides = array<i32: 1, 2, 2, 1>} : memref<1x12x12x32xf32, #tpu.memory_space<vmem>>, vector<1x4x4x32xf32>
    %21 = vector.shape_cast %20 : vector<1x4x4x32xf32> to vector<4x4x32xf32>
    %22 = vector.extract_strided_slice %0 {offsets = [1, 0, 0], sizes = [1, 1, 32], strides = [1, 1, 1]} : vector<3x3x32xf32> to vector<1x1x32xf32>
    %23 = vector.broadcast %22 : vector<1x1x32xf32> to vector<4x4x32xf32>
    %24 = arith.mulf %21, %23 : vector<4x4x32xf32>
    %25 = arith.addf %19, %24 : vector<4x4x32xf32>
    %c0_16 = arith.constant 0 : index
    %c1_17 = arith.constant 1 : index
    %c1_18 = arith.constant 1 : index
    %c0_19 = arith.constant 0 : index
    %26 = tpu.strided_load %arg1[%c0_16, %c1_17, %c1_18, %c0_19] {strides = array<i32: 1, 2, 2, 1>} : memref<1x12x12x32xf32, #tpu.memory_space<vmem>>, vector<1x4x4x32xf32>
    %27 = vector.shape_cast %26 : vector<1x4x4x32xf32> to vector<4x4x32xf32>
    %28 = vector.extract_strided_slice %0 {offsets = [1, 1, 0], sizes = [1, 1, 32], strides = [1, 1, 1]} : vector<3x3x32xf32> to vector<1x1x32xf32>
    %29 = vector.broadcast %28 : vector<1x1x32xf32> to vector<4x4x32xf32>
    %30 = arith.mulf %27, %29 : vector<4x4x32xf32>
    %31 = arith.addf %25, %30 : vector<4x4x32xf32>
    %c0_20 = arith.constant 0 : index
    %c1_21 = arith.constant 1 : index
    %c2_22 = arith.constant 2 : index
    %c0_23 = arith.constant 0 : index
    %32 = tpu.strided_load %arg1[%c0_20, %c1_21, %c2_22, %c0_23] {strides = array<i32: 1, 2, 2, 1>} : memref<1x12x12x32xf32, #tpu.memory_space<vmem>>, vector<1x4x4x32xf32>
    %33 = vector.shape_cast %32 : vector<1x4x4x32xf32> to vector<4x4x32xf32>
    %34 = vector.extract_strided_slice %0 {offsets = [1, 2, 0], sizes = [1, 1, 32], strides = [1, 1, 1]} : vector<3x3x32xf32> to vector<1x1x32xf32>
    %35 = vector.broadcast %34 : vector<1x1x32xf32> to vector<4x4x32xf32>
    %36 = arith.mulf %33, %35 : vector<4x4x32xf32>
    %37 = arith.addf %31, %36 : vector<4x4x32xf32>
    %c0_24 = arith.constant 0 : index
    %c2_25 = arith.constant 2 : index
    %c0_26 = arith.constant 0 : index
    %c0_27 = arith.constant 0 : index
    %38 = tpu.strided_load %arg1[%c0_24, %c2_25, %c0_26, %c0_27] {strides = array<i32: 1, 2, 2, 1>} : memref<1x12x12x32xf32, #tpu.memory_space<vmem>>, vector<1x4x4x32xf32>
    %39 = vector.shape_cast %38 : vector<1x4x4x32xf32> to vector<4x4x32xf32>
    %40 = vector.extract_strided_slice %0 {offsets = [2, 0, 0], sizes = [1, 1, 32], strides = [1, 1, 1]} : vector<3x3x32xf32> to vector<1x1x32xf32>
    %41 = vector.broadcast %40 : vector<1x1x32xf32> to vector<4x4x32xf32>
    %42 = arith.mulf %39, %41 : vector<4x4x32xf32>
    %43 = arith.addf %37, %42 : vector<4x4x32xf32>
    %c0_28 = arith.constant 0 : index
    %c2_29 = arith.constant 2 : index
    %c1_30 = arith.constant 1 : index
    %c0_31 = arith.constant 0 : index
    %44 = tpu.strided_load %arg1[%c0_28, %c2_29, %c1_30, %c0_31] {strides = array<i32: 1, 2, 2, 1>} : memref<1x12x12x32xf32, #tpu.memory_space<vmem>>, vector<1x4x4x32xf32>
    %45 = vector.shape_cast %44 : vector<1x4x4x32xf32> to vector<4x4x32xf32>
    %46 = vector.extract_strided_slice %0 {offsets = [2, 1, 0], sizes = [1, 1, 32], strides = [1, 1, 1]} : vector<3x3x32xf32> to vector<1x1x32xf32>
    %47 = vector.broadcast %46 : vector<1x1x32xf32> to vector<4x4x32xf32>
    %48 = arith.mulf %45, %47 : vector<4x4x32xf32>
    %49 = arith.addf %43, %48 : vector<4x4x32xf32>
    %c0_32 = arith.constant 0 : index
    %c2_33 = arith.constant 2 : index
    %c2_34 = arith.constant 2 : index
    %c0_35 = arith.constant 0 : index
    %50 = tpu.strided_load %arg1[%c0_32, %c2_33, %c2_34, %c0_35] {strides = array<i32: 1, 2, 2, 1>} : memref<1x12x12x32xf32, #tpu.memory_space<vmem>>, vector<1x4x4x32xf32>
    %51 = vector.shape_cast %50 : vector<1x4x4x32xf32> to vector<4x4x32xf32>
    %52 = vector.extract_strided_slice %0 {offsets = [2, 2, 0], sizes = [1, 1, 32], strides = [1, 1, 1]} : vector<3x3x32xf32> to vector<1x1x32xf32>
    %53 = vector.broadcast %52 : vector<1x1x32xf32> to vector<4x4x32xf32>
    %54 = arith.mulf %51, %53 : vector<4x4x32xf32>
    %55 = arith.addf %49, %54 : vector<4x4x32xf32>
    %c0_36 = arith.constant 0 : index
    %c0_37 = arith.constant 0 : index
    %56 = vector.load %arg3[%c0_36, %c0_37] : memref<1x32xf32, #tpu.memory_space<vmem>>, vector<1x32xf32>
    %57 = vector.shape_cast %56 : vector<1x32xf32> to vector<1x1x32xf32>
    %58 = vector.broadcast %57 : vector<1x1x32xf32> to vector<4x4x32xf32>
    %59 = arith.addf %55, %58 : vector<4x4x32xf32>
    %cst_38 = arith.constant dense<0.000000e+00> : vector<4x4xf32>
    %60 = vector.multi_reduction <add>, %59, %cst_38 [2] : vector<4x4x32xf32> to vector<4x4xf32>
    %61 = vector.shape_cast %60 : vector<4x4xf32> to vector<4x4x1xf32>
    %cst_39 = arith.constant 3.200000e+01 : f32
    %62 = vector.broadcast %cst_39 : f32 to vector<4x4x1xf32>
    %63 = arith.divf %61, %62 : vector<4x4x1xf32>
    %64 = vector.broadcast %63 : vector<4x4x1xf32> to vector<4x4x32xf32>
    %65 = arith.subf %59, %64 : vector<4x4x32xf32>
    %66 = arith.mulf %65, %65 : vector<4x4x32xf32>
    %cst_40 = arith.constant dense<0.000000e+00> : vector<4x4xf32>
    %67 = vector.multi_reduction <add>, %66, %cst_40 [2] : vector<4x4x32xf32> to vector<4x4xf32>
    %68 = vector.shape_cast %67 : vector<4x4xf32> to vector<4x4x1xf32>
    %cst_41 = arith.constant 3.200000e+01 : f32
    %69 = vector.broadcast %cst_41 : f32 to vector<4x4x1xf32>
    %70 = arith.divf %68, %69 : vector<4x4x1xf32>
    %71 = vector.broadcast %63 : vector<4x4x1xf32> to vector<4x4x32xf32>
    %72 = arith.subf %59, %71 : vector<4x4x32xf32>
    %cst_42 = arith.constant 9.99999974E-6 : f32
    %73 = vector.broadcast %cst_42 : f32 to vector<4x4x1xf32>
    %74 = arith.addf %70, %73 : vector<4x4x1xf32>
    %75 = math.rsqrt %74 : vector<4x4x1xf32>
    %76 = vector.broadcast %75 : vector<4x4x1xf32> to vector<4x4x32xf32>
    %77 = arith.mulf %72, %76 : vector<4x4x32xf32>
    %c0_43 = arith.constant 0 : index
    %c0_44 = arith.constant 0 : index
    %78 = vector.load %arg4[%c0_43, %c0_44] : memref<1x32xf32, #tpu.memory_space<vmem>>, vector<1x32xf32>
    %79 = vector.shape_cast %78 : vector<1x32xf32> to vector<1x1x32xf32>
    %80 = vector.broadcast %79 : vector<1x1x32xf32> to vector<4x4x32xf32>
    %81 = arith.mulf %77, %80 : vector<4x4x32xf32>
    %c0_45 = arith.constant 0 : index
    %c0_46 = arith.constant 0 : index
    %82 = vector.load %arg5[%c0_45, %c0_46] : memref<1x32xf32, #tpu.memory_space<vmem>>, vector<1x32xf32>
    %83 = vector.shape_cast %82 : vector<1x32xf32> to vector<1x1x32xf32>
    %84 = vector.broadcast %83 : vector<1x1x32xf32> to vector<4x4x32xf32>
    %85 = arith.addf %81, %84 : vector<4x4x32xf32>
    %c0_47 = arith.constant 0 : index
    %c0_48 = arith.constant 0 : index
    %c0_49 = arith.constant 0 : index
    %c0_50 = arith.constant 0 : index
    %86 = vector.load %arg6[%c0_47, %c0_48, %c0_49, %c0_50] : memref<1x4x4x32xf32, #tpu.memory_space<vmem>>, vector<1x4x4x32xf32>
    %87 = vector.shape_cast %86 : vector<1x4x4x32xf32> to vector<4x4x32xf32>
    %88 = vector.shape_cast %85 : vector<4x4x32xf32> to vector<1x4x4x32xf32>
    tpu.vector_store %arg6[%c0_47, %c0_48, %c0_49, %c0_50], %88 {strides = array<i32>} : memref<1x4x4x32xf32, #tpu.memory_space<vmem>>, vector<1x4x4x32xf32>,
    return
  }
  func.func @transform_0(%arg0: i32) -> (i32, i32, i32, i32) {
    %c0_i32 = arith.constant 0 : i32
    %c0_i32_0 = arith.constant 0 : i32
    %c0_i32_1 = arith.constant 0 : i32
    %c0_i32_2 = arith.constant 0 : i32
    return %arg0, %c0_i32, %c0_i32_0, %c0_i32_1 : i32, i32, i32, i32
  }
  func.func @transform_1(%arg0: i32) -> (i32, i32, i32) {
    %c0_i32 = arith.constant 0 : i32
    %c0_i32_0 = arith.constant 0 : i32
    %c0_i32_1 = arith.constant 0 : i32
    %c0_i32_2 = arith.constant 0 : i32
    return %c0_i32, %c0_i32_0, %c0_i32_1 : i32, i32, i32
  }
  func.func @transform_2(%arg0: i32) -> (i32, i32) {
    %c0_i32 = arith.constant 0 : i32
    %c0_i32_0 = arith.constant 0 : i32
    %c0_i32_1 = arith.constant 0 : i32
    return %c0_i32, %c0_i32_0 : i32, i32
  }
  func.func @transform_3(%arg0: i32) -> (i32, i32) {
    %c0_i32 = arith.constant 0 : i32
    %c0_i32_0 = arith.constant 0 : i32
    %c0_i32_1 = arith.constant 0 : i32
    return %c0_i32, %c0_i32_0 : i32, i32
  }
  func.func @transform_4(%arg0: i32) -> (i32, i32) {
    %c0_i32 = arith.constant 0 : i32
    %c0_i32_0 = arith.constant 0 : i32
    %c0_i32_1 = arith.constant 0 : i32
    return %c0_i32, %c0_i32_0 : i32, i32
  }
  func.func @transform_5(%arg0: i32) -> (i32, i32, i32, i32) {
    %c0_i32 = arith.constant 0 : i32
    %c0_i32_0 = arith.constant 0 : i32
    %c0_i32_1 = arith.constant 0 : i32
    %c0_i32_2 = arith.constant 0 : i32
    return %arg0, %c0_i32, %c0_i32_0, %c0_i32_1 : i32, i32, i32, i32
  }
}

</mosaic_0001>

<llo_original>
// kernel: tpu_custom_call.1
$region0: #{tpu_custom_call.1}
  #allocation0 [shape = 'u32[]', space=smem, size = 0x4, offset = 0x4, fixed_abs, tag = 'smem constant byte address 0x4 - core index']
  #allocation1 [shape = 'u32[144,128]{1,0:T(1,128)}', space=vmem, size = 0x12000, scoped, tag = 'internal scratch']
  %s0 = inlined_call_operand.vmem [shape: f32[2,12,12,32], index: 0, kind: input, shape index: {}]
  %s1 = inlined_call_operand.vmem [shape: f32[3,3,32], index: 1, kind: input, shape index: {}]
  %s2 = inlined_call_operand.vmem [shape: f32[1,32], index: 2, kind: input, shape index: {}]
  %s3 = inlined_call_operand.vmem [shape: f32[1,32], index: 3, kind: input, shape index: {}]
  %s4 = inlined_call_operand.vmem [shape: f32[1,32], index: 4, kind: input, shape index: {}]
  %s5 = inlined_call_operand.hbm [shape: f32[2,4,4,32], index: 5, kind: output, shape index: {}]
  %s6 = sld [smem:[#allocation0]]
  $region53: #{tpu_custom_call.1} parent=0
    _
  %s8 = ssub.s32 1, %s6
  %s9 = scalar_select 0, %s8, %s6
  $region1: #{tpu_custom_call.1} parent=0
    #allocation2 [shape = 'u8[16384]{0}', space=vmem, size = 0x4000, scoped, tag = 'output window, operand 0']
    #allocation3 [shape = 's32[2]{0}', space=sflag, size = 0x8, scoped, tag = 'scoped memory for tpu_custom_call.1']
    %10 = vsyncpa [#allocation3], 0
    %s11 = scalar_lea.sflag [#allocation3], 1
    %12 = vsyncpa %s11, 0
    loop: start=0, step=1, limit=4
    $region2: #{tpu_custom_call.1} parent=1 // loop_pre_header
      _
    $region3: #{tpu_custom_call.1} parent=1 // loop_header
      %s14 = sphi 0, %s18
      %p15 = scmp.ge.s32.totalorder %s14, 4
      %s24 = sphi 0, %s26
      %s27 = sphi 0, %s24
      %s28 = sphi 0, %s27
      %s44 = sphi 0, %s28
      %s48 = sphi 0, %s48
      %s50 = sphi 0, %s48
      %s51 = sphi 0, %s50
      %s65 = sphi 0, %s51
      %s69 = sphi 0, %s69
      %s71 = sphi 0, %s69
      %s72 = sphi 0, %s71
      %s86 = sphi 0, %s72
      %s90 = sphi 0, %s90
      %s92 = sphi 0, %s90
      %s93 = sphi 0, %s92
      %s107 = sphi 0, %s93
      %s111 = sphi 0, %s111
      %s113 = sphi 0, %s111
      %s114 = sphi 0, %s113
      %s128 = sphi 0, %s114
      %s134 = sphi 0, %s136
      %s137 = sphi 0, %s134
      %s138 = sphi 0, %s137
      %s154 = sphi 0, %s138
    $region4: #{tpu_custom_call.1} parent=1 // loop_header_branch
      %17 = sbr.rel (%p15) target = $region8
    $region5: #{tpu_custom_call.1} parent=1 // loop_body
      %s19 = ssub.s32 %s14, 1
      %s20 = ssub.s32 %s14, 2
      %s21 = sadd.s32 %s14, 1
      %s22 = ssub.s32 %s14, %s21
      %p23 = scmp.eq.s32.totalorder %s22, 0
      %s25 = sadd.s32 %s24, 1
      %s26 = scalar_select %p23, %s24, %s25
      %p29 = pneg %p23
      %p30 = scmp.eq.s32.totalorder %s14, 1
      %p31 = por %p29, %p30
      %p32 = scmp.ne.s32.totalorder %s24, %s27
      %p33 = scmp.eq.s32.totalorder %s14, 0
      %p34 = por %p32, %p33
      %p35 = scmp.ne.s32.totalorder %s24, %s27
      %p36 = scmp.eq.s32.totalorder %s19, 1
      %p37 = por %p35, %p36
      %p38 = scmp.ne.s32.totalorder %s27, %s28
      %p39 = scmp.eq.s32.totalorder %s19, 0
      %p40 = por %p38, %p39
      %p41 = scmp.ne.s32.totalorder %s27, %s28
      %p42 = scmp.eq.s32.totalorder %s20, 1
      %p43 = por %p41, %p42
      %p45 = scmp.ne.s32.totalorder %s28, %s44
      %p46 = scmp.eq.s32.totalorder %s20, 0
      %p47 = por %p45, %p46
      %s49 = sadd.s32 %s48, 1
      %p52 = scmp.eq.s32.totalorder %s14, 1
      %p53 = scmp.ne.s32.totalorder %s48, %s50
      %p54 = scmp.eq.s32.totalorder %s14, 0
      %p55 = por %p53, %p54
      %p56 = scmp.ne.s32.totalorder %s48, %s50
      %p57 = scmp.eq.s32.totalorder %s19, 1
      %p58 = por %p56, %p57
      %p59 = scmp.ne.s32.totalorder %s50, %s51
      %p60 = scmp.eq.s32.totalorder %s19, 0
      %p61 = por %p59, %p60
      %p62 = scmp.ne.s32.totalorder %s50, %s51
      %p63 = scmp.eq.s32.totalorder %s20, 1
      %p64 = por %p62, %p63
      %p66 = scmp.ne.s32.totalorder %s51, %s65
      %p67 = scmp.eq.s32.totalorder %s20, 0
      %p68 = por %p66, %p67
      %s70 = sadd.s32 %s69, 1
      %p73 = scmp.eq.s32.totalorder %s14, 1
      %p74 = scmp.ne.s32.totalorder %s69, %s71
      %p75 = scmp.eq.s32.totalorder %s14, 0
      %p76 = por %p74, %p75
      %p77 = scmp.ne.s32.totalorder %s69, %s71
      %p78 = scmp.eq.s32.totalorder %s19, 1
      %p79 = por %p77, %p78
      %p80 = scmp.ne.s32.totalorder %s71, %s72
      %p81 = scmp.eq.s32.totalorder %s19, 0
      %p82 = por %p80, %p81
      %p83 = scmp.ne.s32.totalorder %s71, %s72
      %p84 = scmp.eq.s32.totalorder %s20, 1
      %p85 = por %p83, %p84
      %p87 = scmp.ne.s32.totalorder %s72, %s86
      %p88 = scmp.eq.s32.totalorder %s20, 0
      %p89 = por %p87, %p88
      %s91 = sadd.s32 %s90, 1
      %p94 = scmp.eq.s32.totalorder %s14, 1
      %p95 = scmp.ne.s32.totalorder %s90, %s92
      %p96 = scmp.eq.s32.totalorder %s14, 0
      %p97 = por %p95, %p96
      %p98 = scmp.ne.s32.totalorder %s90, %s92
      %p99 = scmp.eq.s32.totalorder %s19, 1
      %p100 = por %p98, %p99
      %p101 = scmp.ne.s32.totalorder %s92, %s93
      %p102 = scmp.eq.s32.totalorder %s19, 0
      %p103 = por %p101, %p102
      %p104 = scmp.ne.s32.totalorder %s92, %s93
      %p105 = scmp.eq.s32.totalorder %s20, 1
      %p106 = por %p104, %p105
      %p108 = scmp.ne.s32.totalorder %s93, %s107
      %p109 = scmp.eq.s32.totalorder %s20, 0
      %p110 = por %p108, %p109
      %s112 = sadd.s32 %s111, 1
      %p115 = scmp.eq.s32.totalorder %s14, 1
      %p116 = scmp.ne.s32.totalorder %s111, %s113
      %p117 = scmp.eq.s32.totalorder %s14, 0
      %p118 = por %p116, %p117
      %p119 = scmp.ne.s32.totalorder %s111, %s113
      %p120 = scmp.eq.s32.totalorder %s19, 1
      %p121 = por %p119, %p120
      %p122 = scmp.ne.s32.totalorder %s113, %s114
      %p123 = scmp.eq.s32.totalorder %s19, 0
      %p124 = por %p122, %p123
      %p125 = scmp.ne.s32.totalorder %s113, %s114
      %p126 = scmp.eq.s32.totalorder %s20, 1
      %p127 = por %p125, %p126
      %p129 = scmp.ne.s32.totalorder %s114, %s128
      %p130 = scmp.eq.s32.totalorder %s20, 0
      %p131 = por %p129, %p130
      %s132 = ssub.s32 %s14, %s21
      %p133 = scmp.eq.s32.totalorder %s132, 0
      %s135 = sadd.s32 %s134, 1
      %s136 = scalar_select %p133, %s134, %s135
      %p139 = pneg %p133
      %p140 = scmp.eq.s32.totalorder %s14, 1
      %p141 = por %p139, %p140
      %p142 = scmp.ne.s32.totalorder %s134, %s137
      %p143 = scmp.eq.s32.totalorder %s14, 0
      %p144 = por %p142, %p143
      %p145 = scmp.ne.s32.totalorder %s134, %s137
      %p146 = scmp.eq.s32.totalorder %s19, 1
      %p147 = por %p145, %p146
      %p148 = scmp.ne.s32.totalorder %s137, %s138
      %p149 = scmp.eq.s32.totalorder %s19, 0
      %p150 = por %p148, %p149
      %p151 = scmp.ne.s32.totalorder %s137, %s138
      %p152 = scmp.eq.s32.totalorder %s20, 1
      %p153 = por %p151, %p152
      %p155 = scmp.ne.s32.totalorder %s138, %s154
      %p156 = scmp.eq.s32.totalorder %s20, 0
      %p157 = por %p155, %p156
      %p158 = scmp.le.s32.totalorder 1, %s14
      %p159 = scmp.lt.s32.totalorder %s14, 3
      %p160 = pnand %p158, %p159
      %p161 = pneg %p160
      // Predicated region
      $region9: #{tpu_custom_call.1} parent=5 // pred_check
        _
      $region10: #{tpu_custom_call.1} parent=5 // pred_check_branch
        %163 = sbr.rel (%p160) target = $region12
      $region11: #{tpu_custom_call.1} parent=5 // pred_region
        %s164 = ssub.s32 %s14, 1
        // Predicated region
        $region13: #{tpu_custom_call.1} parent=11 // pred_check
          %p165 = pneg %p61
        $region14: #{tpu_custom_call.1} parent=11 // pred_check_branch
          %167 = sbr.rel (%p165) target = $region16
        $region15: #{tpu_custom_call.1} parent=11 // pred_region
          _
        $region16: #{tpu_custom_call.1} parent=11 // pred_fallthru
          _
        // Predicated region
        $region17: #{tpu_custom_call.1} parent=11 // pred_check
          %p168 = pneg %p82
        $region18: #{tpu_custom_call.1} parent=11 // pred_check_branch
          %170 = sbr.rel (%p168) target = $region20
        $region19: #{tpu_custom_call.1} parent=11 // pred_region
          _
        $region20: #{tpu_custom_call.1} parent=11 // pred_fallthru
          _
        // Predicated region
        $region21: #{tpu_custom_call.1} parent=11 // pred_check
          %p171 = pneg %p103
        $region22: #{tpu_custom_call.1} parent=11 // pred_check_branch
          %173 = sbr.rel (%p171) target = $region24
        $region23: #{tpu_custom_call.1} parent=11 // pred_region
          _
        $region24: #{tpu_custom_call.1} parent=11 // pred_fallthru
          _
        // Predicated region
        $region25: #{tpu_custom_call.1} parent=11 // pred_check
          %p174 = pneg %p124
        $region26: #{tpu_custom_call.1} parent=11 // pred_check_branch
          %176 = sbr.rel (%p174) target = $region28
        $region27: #{tpu_custom_call.1} parent=11 // pred_region
          _
        $region28: #{tpu_custom_call.1} parent=11 // pred_fallthru
          _
      $region12: #{tpu_custom_call.1} parent=5 // pred_fallthru
        _
      %p177 = scmp.lt.s32.totalorder %s14, 2
      // Predicated region
      $region29: #{tpu_custom_call.1} parent=5 // pred_check
        %p178 = pneg %p177
      $region30: #{tpu_custom_call.1} parent=5 // pred_check_branch
        %180 = sbr.rel (%p178) target = $region32
      $region31: #{tpu_custom_call.1} parent=5 // pred_region
        // Predicated region
        $region33: #{tpu_custom_call.1} parent=31 // pred_check
          %p181 = pneg %p34
        $region34: #{tpu_custom_call.1} parent=31 // pred_check_branch
          %183 = sbr.rel (%p181) target = $region36
        $region35: #{tpu_custom_call.1} parent=31 // pred_region
          %p184 = scmp.lt.s32.totalorder %s14, 1
          %s185 = scalar_select %p184, %s14, 1
          %s186 = smul.addr %s185, 24
          %s187 = smul.addr %s186, 8
          %s188 = scalar_lea.vmem %s0, %s187
        $region36: #{tpu_custom_call.1} parent=31 // pred_fallthru
          _
      $region32: #{tpu_custom_call.1} parent=5 // pred_fallthru
        _
      %p189 = scmp.le.s32.totalorder 1, %s14
      %p190 = scmp.lt.s32.totalorder %s14, 3
      %p191 = pnand %p189, %p190
      %p192 = pneg %p191
      // Predicated region
      $region37: #{tpu_custom_call.1} parent=5 // pred_check
        _
      $region38: #{tpu_custom_call.1} parent=5 // pred_check_branch
        %194 = sbr.rel (%p191) target = $region40
      $region39: #{tpu_custom_call.1} parent=5 // pred_region
        %s195 = ssub.s32 %s14, 1
        %p196 = scmp.lt.s32.totalorder %s19, 1
        %s197 = scalar_select %p196, %s19, 1
        %s198 = smul.addr %s197, 24
        %s199 = smul.addr %s198, 8
        %s200 = scalar_lea.vmem %s0, %s199
        %p201 = pneg %p40
        %p202 = pneg %p37
        %p203 = pneg %p61
        %p204 = pneg %p58
        %p205 = pneg %p82
        %p206 = pneg %p79
        %p207 = pneg %p103
        %p208 = pneg %p100
        %p209 = pneg %p124
        %p210 = pneg %p121
        %p211 = pneg %p150
        %p212 = pneg %p147
        %s213 = sand.u32 %s137, 1
        %s214 = scalar_lea.sflag [#allocation3], %s213
        %s215 = sand.u32 %s137, 1
        %s216 = smul.addr %s215, 16
        %s217 = scalar_lea.vmem [#allocation2], %s216
        %p218 = scmp.lt.s32.totalorder %s19, 1
        %s219 = scalar_select %p218, %s19, 1
        %s220 = smul.addr %s219, 24
        %s221 = smul.addr %s220, 8
        %s222 = scalar_lea.vmem %s0, %s221
        %v223 = vld [vmem:[%s1] sm:$0x7]
        %v224 = vld [vmem:[%s1 + $0x4] sm:$0x7]
        %v225 = vld [vmem:[%s1 + $0x8] sm:$0x7]
        %v226 = vld [vmem:[%s222] ss:$2 sm:$0xf]
        %s227 = scalar_lea.vmem %s222, 32
        %v228 = vld [vmem:[%s227] ss:$2 sm:$0xf]
        %s229 = scalar_lea.vmem %s222, 64
        %v230 = vld [vmem:[%s229] ss:$2 sm:$0xf]
        %s231 = scalar_lea.vmem %s222, 96
        %v232 = vld [vmem:[%s231] ss:$2 sm:$0xf]
        %v233 = vlaneseq
        %v234 = vshrl.u32 %v233, 7
        %v235 = vsub.s32 0, %v234
        %v236 = vrot.slane %v223, %v235
        %v237 = vmul.f32 %v226, %v236
        %v238 = vmul.f32 %v228, %v236
        %v239 = vmul.f32 %v230, %v236
        %v240 = vmul.f32 %v232, %v236
        %v241 = vadd.f32 %v237, 0.0
        %v242 = vadd.f32 %v238, 0.0
        %v243 = vadd.f32 %v239, 0.0
        %v244 = vadd.f32 %v240, 0.0
        %s245 = scalar_lea.vmem %s222, 1
        %v246 = vld [vmem:[%s245] ss:$2 sm:$0xf]
        %s247 = scalar_lea.vmem %s222, 33
        %v248 = vld [vmem:[%s247] ss:$2 sm:$0xf]
        %s249 = scalar_lea.vmem %s222, 65
        %v250 = vld [vmem:[%s249] ss:$2 sm:$0xf]
        %s251 = scalar_lea.vmem %s222, 97
        %v252 = vld [vmem:[%s251] ss:$2 sm:$0xf]
        %v253 = vlaneseq
        %v254 = vshrl.u32 %v253, 7
        %v255 = vsub.s32 1, %v254
        %v256 = vrot.slane %v223, %v255
        %v257 = vmul.f32 %v246, %v256
        %v258 = vmul.f32 %v248, %v256
        %v259 = vmul.f32 %v250, %v256
        %v260 = vmul.f32 %v252, %v256
        %v261 = vadd.f32 %v241, %v257
        %v262 = vadd.f32 %v242, %v258
        %v263 = vadd.f32 %v243, %v259
        %v264 = vadd.f32 %v244, %v260
        %s265 = scalar_lea.vmem %s222, 2
        %v266 = vld [vmem:[%s265] ss:$2 sm:$0xf]
        %s267 = scalar_lea.vmem %s222, 34
        %v268 = vld [vmem:[%s267] ss:$2 sm:$0xf]
        %s269 = scalar_lea.vmem %s222, 66
        %v270 = vld [vmem:[%s269] ss:$2 sm:$0xf]
        %s271 = scalar_lea.vmem %s222, 98
        %v272 = vld [vmem:[%s271] ss:$2 sm:$0xf]
        %v273 = vlaneseq
        %v274 = vshrl.u32 %v273, 7
        %v275 = vsub.s32 2, %v274
        %v276 = vrot.slane %v223, %v275
        %v277 = vmul.f32 %v266, %v276
        %v278 = vmul.f32 %v268, %v276
        %v279 = vmul.f32 %v270, %v276
        %v280 = vmul.f32 %v272, %v276
        %v281 = vadd.f32 %v261, %v277
        %v282 = vadd.f32 %v262, %v278
        %v283 = vadd.f32 %v263, %v279
        %v284 = vadd.f32 %v264, %v280
        %s285 = scalar_lea.vmem %s222, 16
        %v286 = vld [vmem:[%s285] ss:$2 sm:$0xf]
        %s287 = scalar_lea.vmem %s285, 32
        %v288 = vld [vmem:[%s287] ss:$2 sm:$0xf]
        %s289 = scalar_lea.vmem %s285, 64
        %v290 = vld [vmem:[%s289] ss:$2 sm:$0xf]
        %s291 = scalar_lea.vmem %s285, 96
        %v292 = vld [vmem:[%s291] ss:$2 sm:$0xf]
        %v293 = vlaneseq
        %v294 = vshrl.u32 %v293, 7
        %v295 = vsub.s32 0, %v294
        %v296 = vrot.slane %v224, %v295
        %v297 = vmul.f32 %v286, %v296
        %v298 = vmul.f32 %v288, %v296
        %v299 = vmul.f32 %v290, %v296
        %v300 = vmul.f32 %v292, %v296
        %v301 = vadd.f32 %v281, %v297
        %v302 = vadd.f32 %v282, %v298
        %v303 = vadd.f32 %v283, %v299
        %v304 = vadd.f32 %v284, %v300
        %s305 = scalar_lea.vmem %s285, 1
        %v306 = vld [vmem:[%s305] ss:$2 sm:$0xf]
        %s307 = scalar_lea.vmem %s285, 33
        %v308 = vld [vmem:[%s307] ss:$2 sm:$0xf]
        %s309 = scalar_lea.vmem %s285, 65
        %v310 = vld [vmem:[%s309] ss:$2 sm:$0xf]
        %s311 = scalar_lea.vmem %s285, 97
        %v312 = vld [vmem:[%s311] ss:$2 sm:$0xf]
        %v313 = vlaneseq
        %v314 = vshrl.u32 %v313, 7
        %v315 = vsub.s32 1, %v314
        %v316 = vrot.slane %v224, %v315
        %v317 = vmul.f32 %v306, %v316
        %v318 = vmul.f32 %v308, %v316
        %v319 = vmul.f32 %v310, %v316
        %v320 = vmul.f32 %v312, %v316
        %v321 = vadd.f32 %v301, %v317
        %v322 = vadd.f32 %v302, %v318
        %v323 = vadd.f32 %v303, %v319
        %v324 = vadd.f32 %v304, %v320
        %s325 = scalar_lea.vmem %s285, 2
        %v326 = vld [vmem:[%s325] ss:$2 sm:$0xf]
        %s327 = scalar_lea.vmem %s285, 34
        %v328 = vld [vmem:[%s327] ss:$2 sm:$0xf]
        %s329 = scalar_lea.vmem %s285, 66
        %v330 = vld [vmem:[%s329] ss:$2 sm:$0xf]
        %s331 = scalar_lea.vmem %s285, 98
        %v332 = vld [vmem:[%s331] ss:$2 sm:$0xf]
        %v333 = vlaneseq
        %v334 = vshrl.u32 %v333, 7
        %v335 = vsub.s32 2, %v334
        %v336 = vrot.slane %v224, %v335
        %v337 = vmul.f32 %v326, %v336
        %v338 = vmul.f32 %v328, %v336
        %v339 = vmul.f32 %v330, %v336
        %v340 = vmul.f32 %v332, %v336
        %v341 = vadd.f32 %v321, %v337
        %v342 = vadd.f32 %v322, %v338
        %v343 = vadd.f32 %v323, %v339
        %v344 = vadd.f32 %v324, %v340
        %s345 = scalar_lea.vmem %s222, 32
        %v346 = vld [vmem:[%s345] ss:$2 sm:$0xf]
        %s347 = scalar_lea.vmem %s345, 32
        %v348 = vld [vmem:[%s347] ss:$2 sm:$0xf]
        %s349 = scalar_lea.vmem %s345, 64
        %v350 = vld [vmem:[%s349] ss:$2 sm:$0xf]
        %s351 = scalar_lea.vmem %s345, 96
        %v352 = vld [vmem:[%s351] ss:$2 sm:$0xf]
        %v353 = vlaneseq
        %v354 = vshrl.u32 %v353, 7
        %v355 = vsub.s32 0, %v354
        %v356 = vrot.slane %v225, %v355
        %v357 = vmul.f32 %v346, %v356
        %v358 = vmul.f32 %v348, %v356
        %v359 = vmul.f32 %v350, %v356
        %v360 = vmul.f32 %v352, %v356
        %v361 = vadd.f32 %v341, %v357
        %v362 = vadd.f32 %v342, %v358
        %v363 = vadd.f32 %v343, %v359
        %v364 = vadd.f32 %v344, %v360
        %s365 = scalar_lea.vmem %s345, 1
        %v366 = vld [vmem:[%s365] ss:$2 sm:$0xf]
        %s367 = scalar_lea.vmem %s345, 33
        %v368 = vld [vmem:[%s367] ss:$2 sm:$0xf]
        %s369 = scalar_lea.vmem %s345, 65
        %v370 = vld [vmem:[%s369] ss:$2 sm:$0xf]
        %s371 = scalar_lea.vmem %s345, 97
        %v372 = vld [vmem:[%s371] ss:$2 sm:$0xf]
        %v373 = vlaneseq
        %v374 = vshrl.u32 %v373, 7
        %v375 = vsub.s32 1, %v374
        %v376 = vrot.slane %v225, %v375
        %v377 = vmul.f32 %v366, %v376
        %v378 = vmul.f32 %v368, %v376
        %v379 = vmul.f32 %v370, %v376
        %v380 = vmul.f32 %v372, %v376
        %v381 = vadd.f32 %v361, %v377
        %v382 = vadd.f32 %v362, %v378
        %v383 = vadd.f32 %v363, %v379
        %v384 = vadd.f32 %v364, %v380
        %s385 = scalar_lea.vmem %s345, 2
        %v386 = vld [vmem:[%s385] ss:$2 sm:$0xf]
        %s387 = scalar_lea.vmem %s345, 34
        %v388 = vld [vmem:[%s387] ss:$2 sm:$0xf]
        %s389 = scalar_lea.vmem %s345, 66
        %v390 = vld [vmem:[%s389] ss:$2 sm:$0xf]
        %s391 = scalar_lea.vmem %s345, 98
        %v392 = vld [vmem:[%s391] ss:$2 sm:$0xf]
        %v393 = vlaneseq
        %v394 = vshrl.u32 %v393, 7
        %v395 = vsub.s32 2, %v394
        %v396 = vrot.slane %v225, %v395
        %v397 = vmul.f32 %v386, %v396
        %v398 = vmul.f32 %v388, %v396
        %v399 = vmul.f32 %v390, %v396
        %v400 = vmul.f32 %v392, %v396
        %v401 = vadd.f32 %v381, %v397
        %v402 = vadd.f32 %v382, %v398
        %v403 = vadd.f32 %v383, %v399
        %v404 = vadd.f32 %v384, %v400
        %v405 = vld [vmem:[%s2] sm:$0x1]
        %v407 = vlaneseq
        %v408 = vshrl.u32 %v407, 7
        %v409 = vsub.s32 0, %v408
        %v410 = vrot.slane %v405, %v409
        %v412 = vadd.f32 %v401, %v410
        %v413 = vadd.f32 %v402, %v410
        %v414 = vadd.f32 %v403, %v410
        %v415 = vadd.f32 %v404, %v410
        %vm416 = vcmask 257024
        %v417 = vsel %vm416, %v412, 0.0
        %418 = vadd.xlane.f32.xlu0 %v417
        %v419 = vpop.xlane.xlu0 %418
        %v420 = vsel %vm416, %v413, 0.0
        %421 = vadd.xlane.f32.xlu0 %v420
        %v422 = vpop.xlane.xlu0 %421
        %v423 = vsel %vm416, %v414, 0.0
        %424 = vadd.xlane.f32.xlu0 %v423
        %v425 = vpop.xlane.xlu0 %424
        %v426 = vsel %vm416, %v415, 0.0
        %427 = vadd.xlane.f32.xlu0 %v426
        %v428 = vpop.xlane.xlu0 %427
        %v429 = vrcp.pop 32.0
        %v430 = vmul.f32 %v419, %v429
        %v431 = vmul.f32 %v422, %v429
        %v432 = vmul.f32 %v425, %v429
        %v433 = vmul.f32 %v428, %v429
        %v434 = vsub.f32 %v412, %v430
        %v435 = vsub.f32 %v413, %v431
        %v436 = vsub.f32 %v414, %v432
        %v437 = vsub.f32 %v415, %v433
        %v438 = vmul.f32 %v434, %v434
        %v439 = vmul.f32 %v435, %v435
        %v440 = vmul.f32 %v436, %v436
        %v441 = vmul.f32 %v437, %v437
        %v442 = vsel %vm416, %v438, 0.0
        %443 = vadd.xlane.f32.xlu0 %v442
        %v444 = vpop.xlane.xlu0 %443
        %v445 = vsel %vm416, %v439, 0.0
        %446 = vadd.xlane.f32.xlu0 %v445
        %v447 = vpop.xlane.xlu0 %446
        %v448 = vsel %vm416, %v440, 0.0
        %449 = vadd.xlane.f32.xlu0 %v448
        %v450 = vpop.xlane.xlu0 %449
        %v451 = vsel %vm416, %v441, 0.0
        %452 = vadd.xlane.f32.xlu0 %v451
        %v453 = vpop.xlane.xlu0 %452
        %v454 = vmul.f32 %v444, %v429
        %v455 = vmul.f32 %v447, %v429
        %v456 = vmul.f32 %v450, %v429
        %v457 = vmul.f32 %v453, %v429
        %v458 = vadd.f32 %v454, 1e-05
        %v459 = vadd.f32 %v455, 1e-05
        %v460 = vadd.f32 %v456, 1e-05
        %v461 = vadd.f32 %v457, 1e-05
        %v462 = vrsqrt.pop %v458
        %v463 = vrsqrt.pop %v459
        %v464 = vrsqrt.pop %v460
        %v465 = vrsqrt.pop %v461
        %v466 = vmul.f32 %v434, %v462
        %v467 = vmul.f32 %v435, %v463
        %v468 = vmul.f32 %v436, %v464
        %v469 = vmul.f32 %v437, %v465
        %v470 = vld [vmem:[%s3] sm:$0x1]
        %v472 = vlaneseq
        %v473 = vshrl.u32 %v472, 7
        %v474 = vsub.s32 0, %v473
        %v475 = vrot.slane %v470, %v474
        %v477 = vmul.f32 %v466, %v475
        %v478 = vmul.f32 %v467, %v475
        %v479 = vmul.f32 %v468, %v475
        %v480 = vmul.f32 %v469, %v475
        %v481 = vld [vmem:[%s4] sm:$0x1]
        %v483 = vlaneseq
        %v484 = vshrl.u32 %v483, 7
        %v485 = vsub.s32 0, %v484
        %v486 = vrot.slane %v481, %v485
        %v488 = vadd.f32 %v477, %v486
        %v489 = vadd.f32 %v478, %v486
        %v490 = vadd.f32 %v479, %v486
        %v491 = vadd.f32 %v480, %v486
        %492 = vst.msk [vmem:[%s217] sm:$0xf] %vm416, %v488
        %493 = vst.msk [vmem:[%s217 + $0x4] sm:$0xf] %vm416, %v489
        %494 = vst.msk [vmem:[%s217 + $0x8] sm:$0xf] %vm416, %v490
        %495 = vst.msk [vmem:[%s217 + $0xc] sm:$0xf] %vm416, %v491
        %s496 = sand.u32 %s137, 1
        %s497 = scalar_lea.sflag [#allocation3], %s496
        %s498 = sand.u32 %s137, 1
        %s499 = smul.addr %s498, 16
        %s500 = scalar_lea.vmem [#allocation2], %s499
        // Predicated region
        $region41: #{tpu_custom_call.1} parent=39 // pred_check
          %p501 = pneg %p147
        $region42: #{tpu_custom_call.1} parent=39 // pred_check_branch
          %503 = sbr.rel (%p501) target = $region44
        $region43: #{tpu_custom_call.1} parent=39 // pred_region
          %s505 = ssub.s32 256, 256
          %506 = vsyncadd %s497, %s505
          %s507 = smul.addr %s19, 4
          %s508 = smul.addr %s507, 64
          %s509 = scalar_lea.hbm %s5, %s508
          %s510 = sshll.u32 %s500, 4
          %s511 = int_to_ptr.vmem [resolvable:$true] %s510
          %516 = dma.vmem_to_hbm [thread:$0]  %s511, 256, %s509, %s497, 64, 64, 4
        $region44: #{tpu_custom_call.1} parent=39 // pred_fallthru
          _
      $region40: #{tpu_custom_call.1} parent=5 // pred_fallthru
        _
      %p517 = scmp.le.s32.totalorder 2, %s14
      // Predicated region
      $region45: #{tpu_custom_call.1} parent=5 // pred_check
        %p518 = pneg %p517
      $region46: #{tpu_custom_call.1} parent=5 // pred_check_branch
        %520 = sbr.rel (%p518) target = $region48
      $region47: #{tpu_custom_call.1} parent=5 // pred_region
        %s521 = ssub.s32 %s14, 2
        // Predicated region
        $region49: #{tpu_custom_call.1} parent=47 // pred_check
          %p522 = pneg %p153
        $region50: #{tpu_custom_call.1} parent=47 // pred_check_branch
          %524 = sbr.rel (%p522) target = $region52
        $region51: #{tpu_custom_call.1} parent=47 // pred_region
          %s525 = sand.u32 %s138, 1
          %s526 = scalar_lea.sflag [#allocation3], %s525
          %s527 = sand.u32 %s138, 1
          %s528 = smul.addr %s527, 16
          %s529 = scalar_lea.vmem [#allocation2], %s528
          %530 = dma.done %s526, 256
        $region52: #{tpu_custom_call.1} parent=47 // pred_fallthru
          _
      $region48: #{tpu_custom_call.1} parent=5 // pred_fallthru
        _
    $region6: #{tpu_custom_call.1} parent=1 // loop_footer
      %s18 = sadd.s32 1, %s14
    $region7: #{tpu_custom_call.1} parent=1 // loop_footer_branch
      %13 = sbr.rel target = $region3
    $region8: #{tpu_custom_call.1} parent=1 // loop_exit
      _
    %531 = vsyncpa [#allocation3], 1
    %s532 = scalar_lea.sflag [#allocation3], 1
    %533 = vsyncpa %s532, 1

</llo_original>
